<compile_context>
chip_gen: v5e
topology: v5e:2x2
jax: 0.10.0
libtpu: 0.0.40
codegen_flags: <defaults>
</compile_context>

<pallas_src>
import functools

import jax
import jax.numpy as jnp
from jax.experimental import pallas as pl
from jax.experimental.pallas import tpu as pltpu

LANE = 128                   # TPU lane width
H1, H2 = 64, 32              # hidden sizes of the policy MLP
PACKED_ROWS = 3 * LANE + 8   # 3 weight blocks of 128 rows + 8 rows for biases/pad


def _round_up(x, m):
    return (x + m - 1) // m * m


def _gumbel_noise(seed, rows, cols):
    """Deterministic Gumbel(0,1) noise from a counter-based 32-bit hash.

    Pure jnp integer/float ops, so it produces bit-identical integers inside
    the Pallas kernel, under interpret mode, and in plain JAX (wrapper check).
    """
    s = seed.astype(jnp.uint32)
    r = rows.astype(jnp.uint32)
    c = cols.astype(jnp.uint32)
    x = (r * jnp.uint32(0x9E3779B9)
         + c * jnp.uint32(0x85EBCA6B)
         + s * jnp.uint32(0xC2B2AE35)
         + jnp.uint32(0x27D4EB2F))
    x = x ^ (x >> 16)
    x = x * jnp.uint32(0x7FEB352D)
    x = x ^ (x >> 15)
    x = x * jnp.uint32(0x846CA68B)
    x = x ^ (x >> 16)
    u24 = (x >> 8).astype(jnp.int32)                      # [0, 2^24), sign-safe
    u = (u24.astype(jnp.float32) + 0.5) * jnp.float32(1.0 / (1 << 24))  # (0,1)
    return -jnp.log(-jnp.log(u))                          # Gumbel(0, 1)


def pack_params(params, obv_dim, action_dim):
    """Packs w1,b1,w2,b2,w3,b3 into one lane-dense (PACKED_ROWS, 128) f32 slab."""
    w1, b1, w2, b2, w3, b3 = params
    p = jnp.zeros((PACKED_ROWS, LANE), jnp.float32)
    p = p.at[0:obv_dim, 0:H1].set(w1)
    p = p.at[LANE:LANE + H1, 0:H2].set(w2)
    p = p.at[2 * LANE:2 * LANE + H2, 0:action_dim].set(w3)
    p = p.at[3 * LANE + 0, 0:H1].set(b1.reshape(-1))
    p = p.at[3 * LANE + 1, 0:H2].set(b2.reshape(-1))
    p = p.at[3 * LANE + 2, 0:action_dim].set(b3.reshape(-1))
    return p


def _make_policy_kernel(action_dim, obv_rows, tile_rows, with_grid):
    """Kernel body; `obv_rows` = feature rows of w1 to use, `tile_rows` = batch tile."""

    def kernel(seed_ref, obv_ref, params_ref, out_ref):
        seed = seed_ref[0]

        # ---- unpack the single packed parameter slab (static ref slices) ----
        w1 = params_ref[0:obv_rows, :]                    # (obv_rows, 128)
        w2 = params_ref[LANE:2 * LANE, :]                 # (128, 128), rows>=64 are 0
        w3 = params_ref[2 * LANE:3 * LANE, :]             # (128, 128), rows>=32 are 0
        b1 = params_ref[3 * LANE + 0:3 * LANE + 1, :]     # (1, 128)
        b2 = params_ref[3 * LANE + 1:3 * LANE + 2, :]     # (1, 128)
        b3 = params_ref[3 * LANE + 2:3 * LANE + 3, :]     # (1, 128)

        x = obv_ref[...]                                  # (tb, obv_rows) — un-padded K

        # mlp1/mlp2 + sigmoid.  Padded lanes of h become sigmoid(0)=0.5, but the
        # corresponding rows of the next weight block are zero -> no effect.
        h1 = jax.nn.sigmoid(
            jnp.dot(x, w1, preferred_element_type=jnp.float32) + b1)
        h2 = jax.nn.sigmoid(
            jnp.dot(h1, w2, preferred_element_type=jnp.float32) + b2)
        logits = jnp.dot(h2, w3, preferred_element_type=jnp.float32) + b3  # (tb, 128)

        # ---- Categorical(logits).sample() via Gumbel-max ----
        rows = jax.lax.broadcasted_iota(jnp.int32, (tile_rows, LANE), 0)
        if with_grid:
            rows = rows + pl.program_id(0) * tile_rows    # global row index
        cols = jax.lax.broadcasted_iota(jnp.int32, (tile_rows, LANE), 1)

        g = _gumbel_noise(seed, rows, cols)
        valid = cols < action_dim
        z = jnp.where(valid, logits + g, jnp.float32(-1e30))   # mask padded lanes
        zmax = jnp.max(z, axis=-1, keepdims=True)
        idx_f = jnp.where(z == zmax, cols.astype(jnp.float32), jnp.float32(LANE))
        action_f = jnp.min(idx_f, axis=-1, keepdims=True)  # (tb,1) exact small int

        # Single lane-dense output slab: logits in lanes [0, action_dim),
        # sampled action stored as an exact integer-valued float in lane 127.
        out_ref[...] = jnp.where(cols == LANE - 1, action_f, logits)

    return kernel


@functools.partial(jax.jit, static_argnames=("action_dim", "batch_tile"))
def policy_forward(obv, packed_params, seed, *, action_dim, batch_tile=512):
    """Full forward pass (MLP + Gumbel-max sampling) in one pallas_call.

    Returns (action, logits).
    """
    assert action_dim <= LANE - 1, "action lane 127 is reserved"
    b, d = obv.shape
    assert d <= LANE
    d_pad = _round_up(d, 8)

    bp_small = _round_up(b, 8)
    if bp_small <= batch_tile:
        tb, bp, num_tiles = bp_small, bp_small, 1
    else:
        tb = batch_tile
        bp = _round_up(b, tb)
        num_tiles = bp // tb

    if bp != b or d_pad != d:
        obv_in = jnp.zeros((bp, d_pad), jnp.float32).at[:b, :d].set(
            obv.astype(jnp.float32))
    else:
        obv_in = obv.astype(jnp.float32)

    out_shape = jax.ShapeDtypeStruct((bp, LANE), jnp.float32)
    kernel = _make_policy_kernel(action_dim, d_pad, tb, num_tiles > 1)
    smem_spec = pl.BlockSpec(memory_space=pltpu.MemorySpace.SMEM)

    if num_tiles == 1:
        # Small batch: single shot, no grid loop at all.
        vmem_full = pl.BlockSpec(memory_space=pltpu.MemorySpace.VMEM)
        out_slab = pl.pallas_call(
            kernel,
            out_shape=out_shape,
            in_specs=[smem_spec, vmem_full, vmem_full],
            out_specs=vmem_full,
        )(seed, obv_in, packed_params)
    else:
        # Large batch: batch-tiled grid; "parallel" lets v7x's 2 TCs split it.
        obv_spec = pl.BlockSpec((tb, d_pad), lambda i: (i, 0))
        params_spec = pl.BlockSpec((PACKED_ROWS, LANE), lambda i: (0, 0))  # DMA once
        out_spec = pl.BlockSpec((tb, LANE), lambda i: (i, 0))              # lane-dense
        out_slab = pl.pallas_call(
            kernel,
            out_shape=out_shape,
            grid=(num_tiles,),
            in_specs=[smem_spec, obv_spec, params_spec],
            out_specs=out_spec,
            compiler_params=pltpu.CompilerParams(
                dimension_semantics=("parallel",)),
        )(seed, obv_in, packed_params)

    action = out_slab[:b, LANE - 1].astype(jnp.int32)
    logits = out_slab[:b, :action_dim]
    return action, logits


def init_params(key, obv_dim, action_dim):
    """Deterministic synthetic parameter init (shapes match the nn.Linear layers)."""
    k1, k2, k3, k4, k5, k6 = jax.random.split(key, 6)
    w1 = jax.random.normal(k1, (obv_dim, 64), jnp.float32) * 0.1
    b1 = jax.random.normal(k2, (1, 64), jnp.float32) * 0.1
    w2 = jax.random.normal(k3, (64, 32), jnp.float32) * 0.1
    b2 = jax.random.normal(k4, (1, 32), jnp.float32) * 0.1
    w3 = jax.random.normal(k5, (32, action_dim), jnp.float32) * 0.1
    b3 = jax.random.normal(k6, (1, action_dim), jnp.float32) * 0.1
    return (w1, b1, w2, b2, w3, b3)


def _reference_logits(obv, params):
    w1, b1, w2, b2, w3, b3 = params
    h1 = jax.nn.sigmoid(obv @ w1 + b1)
    h2 = jax.nn.sigmoid(h1 @ w2 + b2)
    return h2 @ w3 + b3


def _check(obv, params, packed, seed, action_dim, batch_tile):
    action, logits = policy_forward(
        obv, packed, seed, action_dim=action_dim, batch_tile=batch_tile)
    jax.block_until_ready((action, logits))

    b = obv.shape[0]
    ref_logits = _reference_logits(obv, params)
    assert jnp.allclose(logits, ref_logits, atol=1e-4, rtol=1e-4), "logits mismatch"
    assert action.shape == (b,) and action.dtype == jnp.int32
    assert bool(jnp.all((action >= 0) & (action < action_dim))), "action out of range"

    # Gumbel-max consistency: recompute the kernel's deterministic noise in
    # plain JAX and confirm the sampled action (near-)maximizes logits + g.
    rows = jnp.broadcast_to(jnp.arange(b, dtype=jnp.int32)[:, None], (b, action_dim))
    cols = jnp.broadcast_to(jnp.arange(action_dim, dtype=jnp.int32)[None, :],
                            (b, action_dim))
    g = _gumbel_noise(seed[0], rows, cols)
    z = logits + g
    chosen = jnp.take_along_axis(z, action[:, None], axis=-1)[:, 0]
    assert bool(jnp.all(chosen >= jnp.max(z, axis=-1) - 1e-3)), \
        "action != argmax(perturbed logits)"


if __name__ == "__main__":
    B, OBV_DIM, ACTION_DIM = 8, 16, 4

    root = jax.random.PRNGKey(0)
    k_params, k_obv, k_obv2 = jax.random.split(root, 3)

    params = init_params(k_params, OBV_DIM, ACTION_DIM)
    packed = pack_params(params, OBV_DIM, ACTION_DIM)
    seed = jnp.array([1234], dtype=jnp.int32)

    # Small batch: single-shot (no grid) path.
    obv = jax.random.normal(k_obv, (B, OBV_DIM), jnp.float32)
    _check(obv, params, packed, seed, ACTION_DIM, batch_tile=512)

    # Larger batch: batch-tiled "parallel" grid path (num_tiles >= 2).
    obv_big = jax.random.normal(k_obv2, (300, OBV_DIM), jnp.float32)
    _check(obv_big, params, packed, seed, ACTION_DIM, batch_tile=128)

    print("KERNEL_OK")
</pallas_src>

<mosaic_0001>
module attributes {stable_mosaic.version = 11 : i64} {
  func.func @kernel(%arg0: memref<1xi32, #tpu.memory_space<smem>>, %arg1: memref<8x16xf32, #tpu.memory_space<vmem>>, %arg2: memref<392x128xf32, #tpu.memory_space<vmem>>, %arg3: memref<8x128xf32, #tpu.memory_space<vmem>>) attributes {dimension_semantics = [], scalar_prefetch = 0 : i64, scratch_operands = 0 : i64, tpu.core_type = #tpu.core_type<tc>} {
    %c0 = arith.constant 0 : index
    %0 = memref.load %arg0[%c0] : memref<1xi32, #tpu.memory_space<smem>>
    %c0_0 = arith.constant 0 : index
    %c0_1 = arith.constant 0 : index
    %1 = vector.load %arg2[%c0_0, %c0_1] : memref<392x128xf32, #tpu.memory_space<vmem>>, vector<16x128xf32>
    %c128 = arith.constant 128 : index
    %c0_2 = arith.constant 0 : index
    %2 = vector.load %arg2[%c128, %c0_2] : memref<392x128xf32, #tpu.memory_space<vmem>>, vector<128x128xf32>
    %c256 = arith.constant 256 : index
    %c0_3 = arith.constant 0 : index
    %3 = vector.load %arg2[%c256, %c0_3] : memref<392x128xf32, #tpu.memory_space<vmem>>, vector<128x128xf32>
    %c384 = arith.constant 384 : index
    %c0_4 = arith.constant 0 : index
    %4 = vector.load %arg2[%c384, %c0_4] : memref<392x128xf32, #tpu.memory_space<vmem>>, vector<1x128xf32>
    %c385 = arith.constant 385 : index
    %c0_5 = arith.constant 0 : index
    %5 = vector.load %arg2[%c385, %c0_5] : memref<392x128xf32, #tpu.memory_space<vmem>>, vector<1x128xf32>
    %c386 = arith.constant 386 : index
    %c0_6 = arith.constant 0 : index
    %6 = vector.load %arg2[%c386, %c0_6] : memref<392x128xf32, #tpu.memory_space<vmem>>, vector<1x128xf32>
    %c0_7 = arith.constant 0 : index
    %c0_8 = arith.constant 0 : index
    %7 = vector.load %arg1[%c0_7, %c0_8] : memref<8x16xf32, #tpu.memory_space<vmem>>, vector<8x16xf32>
    %cst = arith.constant dense<0.000000e+00> : vector<8x128xf32>
    %8 = tpu.matmul %7, %1, %cst {dimension_numbers = #tpu.dot_dimension_numbers<[1], [0], [0], [1], [0, 0, 1, 1], [], []>} : vector<8x16xf32>, vector<16x128xf32>, vector<8x128xf32> -> vector<8x128xf32>
    %9 = vector.broadcast %4 : vector<1x128xf32> to vector<8x128xf32>
    %10 = arith.addf %8, %9 : vector<8x128xf32>
    %11 = arith.negf %10 : vector<8x128xf32>
    %12 = math.exp %11 : vector<8x128xf32>
    %cst_9 = arith.constant 1.000000e+00 : f32
    %13 = vector.broadcast %cst_9 : f32 to vector<8x128xf32>
    %14 = arith.addf %13, %12 : vector<8x128xf32>
    %15 = arith.divf %13, %14 : vector<8x128xf32>
    %cst_10 = arith.constant dense<0.000000e+00> : vector<8x128xf32>
    %16 = tpu.matmul %15, %2, %cst_10 {dimension_numbers = #tpu.dot_dimension_numbers<[1], [0], [0], [1], [0, 0, 1, 1], [], []>} : vector<8x128xf32>, vector<128x128xf32>, vector<8x128xf32> -> vector<8x128xf32>
    %17 = vector.broadcast %5 : vector<1x128xf32> to vector<8x128xf32>
    %18 = arith.addf %16, %17 : vector<8x128xf32>
    %19 = arith.negf %18 : vector<8x128xf32>
    %20 = math.exp %19 : vector<8x128xf32>
    %cst_11 = arith.constant 1.000000e+00 : f32
    %21 = vector.broadcast %cst_11 : f32 to vector<8x128xf32>
    %22 = arith.addf %21, %20 : vector<8x128xf32>
    %23 = arith.divf %21, %22 : vector<8x128xf32>
    %cst_12 = arith.constant dense<0.000000e+00> : vector<8x128xf32>
    %24 = tpu.matmul %23, %3, %cst_12 {dimension_numbers = #tpu.dot_dimension_numbers<[1], [0], [0], [1], [0, 0, 1, 1], [], []>} : vector<8x128xf32>, vector<128x128xf32>, vector<8x128xf32> -> vector<8x128xf32>
    %25 = vector.broadcast %6 : vector<1x128xf32> to vector<8x128xf32>
    %26 = arith.addf %24, %25 : vector<8x128xf32>
    %27 = tpu.iota {dimensions = array<i32: 0>} : vector<8x128xi32>
    %28 = tpu.iota {dimensions = array<i32: 1>} : vector<8x128xi32>
    %c-1640531527_i32 = arith.constant -1640531527 : i32
    %29 = vector.broadcast %c-1640531527_i32 : i32 to vector<8x128xi32>
    %30 = arith.muli %27, %29 : vector<8x128xi32>
    %c-2048144789_i32 = arith.constant -2048144789 : i32
    %31 = vector.broadcast %c-2048144789_i32 : i32 to vector<8x128xi32>
    %32 = arith.muli %28, %31 : vector<8x128xi32>
    %33 = arith.addi %30, %32 : vector<8x128xi32>
    %c-1028477387_i32 = arith.constant -1028477387 : i32
    %34 = arith.muli %0, %c-1028477387_i32 : i32
    %35 = vector.broadcast %34 : i32 to vector<8x128xi32>
    %36 = arith.addi %33, %35 : vector<8x128xi32>
    %c668265263_i32 = arith.constant 668265263 : i32
    %37 = vector.broadcast %c668265263_i32 : i32 to vector<8x128xi32>
    %38 = arith.addi %36, %37 : vector<8x128xi32>
    %c16_i32 = arith.constant 16 : i32
    %39 = vector.broadcast %c16_i32 : i32 to vector<8x128xi32>
    %40 = arith.shrui %38, %39 : vector<8x128xi32>
    %41 = arith.xori %38, %40 : vector<8x128xi32>
    %c2146121005_i32 = arith.constant 2146121005 : i32
    %42 = vector.broadcast %c2146121005_i32 : i32 to vector<8x128xi32>
    %43 = arith.muli %41, %42 : vector<8x128xi32>
    %c15_i32 = arith.constant 15 : i32
    %44 = vector.broadcast %c15_i32 : i32 to vector<8x128xi32>
    %45 = arith.shrui %43, %44 : vector<8x128xi32>
    %46 = arith.xori %43, %45 : vector<8x128xi32>
    %c-2073254261_i32 = arith.constant -2073254261 : i32
    %47 = vector.broadcast %c-2073254261_i32 : i32 to vector<8x128xi32>
    %48 = arith.muli %46, %47 : vector<8x128xi32>
    %c16_i32_13 = arith.constant 16 : i32
    %49 = vector.broadcast %c16_i32_13 : i32 to vector<8x128xi32>
    %50 = arith.shrui %48, %49 : vector<8x128xi32>
    %51 = arith.xori %48, %50 : vector<8x128xi32>
    %c8_i32 = arith.constant 8 : i32
    %52 = vector.broadcast %c8_i32 : i32 to vector<8x128xi32>
    %53 = arith.shrui %51, %52 : vector<8x128xi32>
    %54 = arith.sitofp %53 : vector<8x128xi32> to vector<8x128xf32>
    %cst_14 = arith.constant 5.000000e-01 : f32
    %55 = vector.broadcast %cst_14 : f32 to vector<8x128xf32>
    %56 = arith.addf %54, %55 : vector<8x128xf32>
    %cst_15 = arith.constant 5.96046448E-8 : f32
    %57 = vector.broadcast %cst_15 : f32 to vector<8x128xf32>
    %58 = arith.mulf %56, %57 : vector<8x128xf32>
    %59 = math.log %58 : vector<8x128xf32>
    %cst_16 = arith.constant 0.000000e+00 : f32
    %60 = vector.broadcast %cst_16 : f32 to vector<8x128xf32>
    %61 = arith.subf %60, %59 : vector<8x128xf32>
    %62 = math.log %61 : vector<8x128xf32>
    %cst_17 = arith.constant 0.000000e+00 : f32
    %63 = vector.broadcast %cst_17 : f32 to vector<8x128xf32>
    %64 = arith.subf %63, %62 : vector<8x128xf32>
    %c4_i32 = arith.constant 4 : i32
    %65 = vector.broadcast %c4_i32 : i32 to vector<8x128xi32>
    %66 = arith.cmpi slt, %28, %65 : vector<8x128xi32>
    %67 = arith.addf %26, %64 : vector<8x128xf32>
    %cst_18 = arith.constant -1.000000e+30 : f32
    %68 = vector.broadcast %cst_18 : f32 to vector<8x128xf32>
    %69 = arith.select %66, %67, %68 : vector<8x128xi1>, vector<8x128xf32>
    %cst_19 = arith.constant dense<0xFF800000> : vector<8xf32>
    %70 = vector.multi_reduction <maximumf>, %69, %cst_19 [1] : vector<8x128xf32> to vector<8xf32>
    %71 = vector.shape_cast %70 : vector<8xf32> to vector<8x1xf32>
    %72 = vector.broadcast %71 : vector<8x1xf32> to vector<8x128xf32>
    %73 = arith.cmpf oeq, %69, %72 : vector<8x128xf32>
    %74 = arith.sitofp %28 : vector<8x128xi32> to vector<8x128xf32>
    %cst_20 = arith.constant 1.280000e+02 : f32
    %75 = vector.broadcast %cst_20 : f32 to vector<8x128xf32>
    %76 = arith.select %73, %74, %75 : vector<8x128xi1>, vector<8x128xf32>
    %cst_21 = arith.constant dense<0x7F800000> : vector<8xf32>
    %77 = vector.multi_reduction <minimumf>, %76, %cst_21 [1] : vector<8x128xf32> to vector<8xf32>
    %78 = vector.shape_cast %77 : vector<8xf32> to vector<8x1xf32>
    %c127_i32 = arith.constant 127 : i32
    %79 = vector.broadcast %c127_i32 : i32 to vector<8x128xi32>
    %80 = arith.cmpi eq, %28, %79 : vector<8x128xi32>
    %81 = vector.shape_cast %78 : vector<8x1xf32> to vector<8x1xf32>
    %82 = vector.broadcast %81 : vector<8x1xf32> to vector<8x128xf32>
    %83 = arith.select %80, %82, %26 : vector<8x128xi1>, vector<8x128xf32>
    %c0_22 = arith.constant 0 : index
    %c0_23 = arith.constant 0 : index
    %84 = vector.load %arg3[%c0_22, %c0_23] : memref<8x128xf32, #tpu.memory_space<vmem>>, vector<8x128xf32>
    tpu.vector_store %arg3[%c0_22, %c0_23], %83 {strides = array<i32>} : memref<8x128xf32, #tpu.memory_space<vmem>>, vector<8x128xf32>,
    return
  }
}

</mosaic_0001>

<llo_original>
// kernel: policy_forward.1
$region0: #{policy_forward.1}
  #allocation0 [shape = 'u32[]', space=smem, size = 0x4, offset = 0x4, fixed_abs, tag = 'smem constant byte address 0x4 - core index']
  #allocation1 [shape = 'u32[72,128]{1,0:T(1,128)}', space=vmem, size = 0x9000, scoped, tag = 'internal scratch']
  #allocation2 [shape = 's32[1]{0:T(128)S(6)}', space=smem, size = 0x200, scoped, tag = 'scoped memory for policy_forward.1']
  %s0 = inlined_call_operand.<no memory space> [shape: s32[1], index: 0, kind: input, shape index: {}]
  %s1 = inlined_call_operand.hbm [shape: f32[8,16], index: 1, kind: input, shape index: {}]
  %s2 = inlined_call_operand.hbm [shape: f32[392,128], index: 2, kind: input, shape index: {}]
  %s3 = inlined_call_operand.vmem [shape: f32[8,128], index: 3, kind: output, shape index: {}]
  %s4 = sld [smem:[#allocation0]]
  $region30: #{policy_forward.1} parent=0
    _
  %s6 = ssub.s32 1, %s4
  %s7 = scalar_select 0, %s6, %s4
  %8 = sst [smem:[#allocation2]] %s0
  $region1: #{policy_forward.1} parent=0
    #allocation3 [shape = 'u8[4096]{0}', space=vmem, size = 0x1000, scoped, tag = 'input window, operand 1, single buffered']
    #allocation4 [shape = 's32[1]{0}', space=sflag, size = 0x4, scoped, tag = 'scoped memory for policy_forward.1']
    #allocation5 [shape = 'u8[200704]{0}', space=vmem, size = 0x31000, scoped, tag = 'input window, operand 2, single buffered']
    #allocation6 [shape = 's32[1]{0}', space=sflag, size = 0x4, scoped, tag = 'scoped memory for policy_forward.1']
    %9 = vsyncpa [#allocation4], 0
    %10 = vsyncpa [#allocation6], 0
    // Predicated region
    $region2: #{policy_forward.1} parent=1 // pred_check
      _
    $region3: #{policy_forward.1} parent=1 // pred_check_branch
      %12 = sbr.rel (0) target = $region5
    $region4: #{policy_forward.1} parent=1 // pred_region
      _
    $region5: #{policy_forward.1} parent=1 // pred_fallthru
      _
    // Predicated region
    $region6: #{policy_forward.1} parent=1 // pred_check
      _
    $region7: #{policy_forward.1} parent=1 // pred_check_branch
      %14 = sbr.rel (0) target = $region9
    $region8: #{policy_forward.1} parent=1 // pred_region
      %16 = vsyncadd [#allocation4], 0
      %s18 = sshll.u32 %s1, 4
      %s19 = int_to_ptr.hbm [resolvable:$true] %s18
      %s20 = sshll.u32 [#allocation3], 4
      %s21 = int_to_ptr.vmem [resolvable:$true] %s20
      %23 = dma.hbm_to_vmem [thread:$0]  %s19, 128, %s21, [#allocation4]
    $region9: #{policy_forward.1} parent=1 // pred_fallthru
      _
    // Predicated region
    $region10: #{policy_forward.1} parent=1 // pred_check
      _
    $region11: #{policy_forward.1} parent=1 // pred_check_branch
      %25 = sbr.rel (0) target = $region13
    $region12: #{policy_forward.1} parent=1 // pred_region
      %27 = vsyncadd [#allocation6], 0
      %s28 = sshll.u32 %s2, 4
      %s29 = int_to_ptr.hbm [resolvable:$true] %s28
      %s30 = sshll.u32 [#allocation5], 4
      %s31 = int_to_ptr.vmem [resolvable:$true] %s30
      %36 = dma.hbm_to_vmem [thread:$0]  %s29, 6272, %s31, [#allocation6], 128, 128, 8
    $region13: #{policy_forward.1} parent=1 // pred_fallthru
      _
    // Predicated region
    $region14: #{policy_forward.1} parent=1 // pred_check
      _
    $region15: #{policy_forward.1} parent=1 // pred_check_branch
      %38 = sbr.rel (0) target = $region17
    $region16: #{policy_forward.1} parent=1 // pred_region
      %40 = dma.done [#allocation4], 128
    $region17: #{policy_forward.1} parent=1 // pred_fallthru
      _
    // Predicated region
    $region18: #{policy_forward.1} parent=1 // pred_check
      _
    $region19: #{policy_forward.1} parent=1 // pred_check_branch
      %42 = sbr.rel (0) target = $region21
    $region20: #{policy_forward.1} parent=1 // pred_region
      %44 = dma.done [#allocation6], 6272
    $region21: #{policy_forward.1} parent=1 // pred_fallthru
      _
    %s45 = sld [smem:[#allocation2]]
    %v46 = vld [vmem:[#allocation5] sm:$0xff]
    %v47 = vld [vmem:[#allocation5 + $0x8] sm:$0xff]
    %v48 = vld [vmem:[#allocation5 + $0x80] sm:$0xff]
    %v49 = vld [vmem:[#allocation5 + $0x88] sm:$0xff]
    %v50 = vld [vmem:[#allocation5 + $0x90] sm:$0xff]
    %v51 = vld [vmem:[#allocation5 + $0x98] sm:$0xff]
    %v52 = vld [vmem:[#allocation5 + $0xa0] sm:$0xff]
    %v53 = vld [vmem:[#allocation5 + $0xa8] sm:$0xff]
    %v54 = vld [vmem:[#allocation5 + $0xb0] sm:$0xff]
    %v55 = vld [vmem:[#allocation5 + $0xb8] sm:$0xff]
    %v56 = vld [vmem:[#allocation5 + $0xc0] sm:$0xff]
    %v57 = vld [vmem:[#allocation5 + $0xc8] sm:$0xff]
    %v58 = vld [vmem:[#allocation5 + $0xd0] sm:$0xff]
    %v59 = vld [vmem:[#allocation5 + $0xd8] sm:$0xff]
    %v60 = vld [vmem:[#allocation5 + $0xe0] sm:$0xff]
    %v61 = vld [vmem:[#allocation5 + $0xe8] sm:$0xff]
    %v62 = vld [vmem:[#allocation5 + $0xf0] sm:$0xff]
    %v63 = vld [vmem:[#allocation5 + $0xf8] sm:$0xff]
    %v64 = vld [vmem:[#allocation5 + $0x100] sm:$0xff]
    %v65 = vld [vmem:[#allocation5 + $0x108] sm:$0xff]
    %v66 = vld [vmem:[#allocation5 + $0x110] sm:$0xff]
    %v67 = vld [vmem:[#allocation5 + $0x118] sm:$0xff]
    %v68 = vld [vmem:[#allocation5 + $0x120] sm:$0xff]
    %v69 = vld [vmem:[#allocation5 + $0x128] sm:$0xff]
    %v70 = vld [vmem:[#allocation5 + $0x130] sm:$0xff]
    %v71 = vld [vmem:[#allocation5 + $0x138] sm:$0xff]
    %v72 = vld [vmem:[#allocation5 + $0x140] sm:$0xff]
    %v73 = vld [vmem:[#allocation5 + $0x148] sm:$0xff]
    %v74 = vld [vmem:[#allocation5 + $0x150] sm:$0xff]
    %v75 = vld [vmem:[#allocation5 + $0x158] sm:$0xff]
    %v76 = vld [vmem:[#allocation5 + $0x160] sm:$0xff]
    %v77 = vld [vmem:[#allocation5 + $0x168] sm:$0xff]
    %v78 = vld [vmem:[#allocation5 + $0x170] sm:$0xff]
    %v79 = vld [vmem:[#allocation5 + $0x178] sm:$0xff]
    %v80 = vld [vmem:[#allocation5 + $0x180] sm:$0x1]
    %v81 = vld [vmem:[#allocation5 + $0x181] sm:$0x1]
    %v82 = vld [vmem:[#allocation5 + $0x182] sm:$0x1]
    %v83 = vld [vmem:[#allocation3] sm:$0xff]
    %v84 = vperm.slane %v80, 0
    %vm85 = vcmask 130048
    %v87 = vsel %vm85, %v83, 0
    %89 = vmatpush.msra.mxu0 0.0
    %90 = vmatpush.msra.mxu0 0.0
    %91 = vmatpush.msra.mxu0 0.0
    %92 = vmatpush.msra.mxu0 0.0
    %93 = vmatpush.msra.mxu0 0.0
    %94 = vmatpush.msra.mxu0 0.0
    %95 = vmatpush.msra.mxu0 0.0
    %96 = vmatpush.msra.mxu0 0.0
    %97 = vmatpush.msra.mxu0 0.0
    %98 = vmatpush.msra.mxu0 0.0
    %99 = vmatpush.msra.mxu0 0.0
    %100 = vmatpush.msra.mxu0 0.0
    %101 = vmatpush.msra.mxu0 0.0
    %102 = vmatpush.msra.mxu0 0.0
    %103 = vmatpush.msra.mxu0 %v47
    %104 = vmatpush.msra.mxu0 %v46
    %105 = vmatmul.f32.gmra.mxu0 %v87
    %v106 = vpop.f32.mrf.mxu0
    %v107 = vadd.f32 %v84, %v106
    %108 = vdwg.mxu0
    %v109 = vxor.u32 %v107, 2147483648
    %v110 = vmul.f32 %v109, 1.442695
    %v111 = vpow.pop %v110
    %v112 = vadd.f32 %v111, 1.0
    %v113 = vrcp.pop %v112
    %v114 = vmul.f32 %v112, %v113
    %v115 = vsub.f32 1.0, %v114
    %v116 = vmul.f32 %v113, %v115
    %v117 = vadd.f32 %v113, %v116
    %vm118 = vweird.f32 %v112
    %vm119 = vweird.f32 %v113
    %vm120 = vmor %vm118, %vm119
    %v121 = vsel %vm120, %v113, %v117
    %v122 = vand.u32 2147483647, %v112
    %vm123 = vcmp.eq.f32.partialorder %v122, 8.507059e+37
    %v124 = vand.u32 %v112, 2147483648
    %v125 = vor.u32 1.1754944e-38, %v124
    %v126 = vsel %vm123, %v125, %v121
    %v127 = vmul.f32 1.0, %v126
    %v128 = vperm.slane %v81, 0
    %129 = vmatpush.msra.mxu0 %v63
    %130 = vmatpush.msra.mxu0 %v62
    %131 = vmatpush.msra.mxu0 %v61
    %132 = vmatpush.msra.mxu0 %v60
    %133 = vmatpush.msra.mxu0 %v59
    %134 = vmatpush.msra.mxu0 %v58
    %135 = vmatpush.msra.mxu0 %v57
    %136 = vmatpush.msra.mxu0 %v56
    %137 = vmatpush.msra.mxu0 %v55
    %138 = vmatpush.msra.mxu0 %v54
    %139 = vmatpush.msra.mxu0 %v53
    %140 = vmatpush.msra.mxu0 %v52
    %141 = vmatpush.msra.mxu0 %v51
    %142 = vmatpush.msra.mxu0 %v50
    %143 = vmatpush.msra.mxu0 %v49
    %144 = vmatpush.msra.mxu0 %v48
    %145 = vmatmul.f32.gmra.mxu0 %v127
    %v146 = vpop.f32.mrf.mxu0
    %v147 = vadd.f32 %v128, %v146
    %148 = vdwg.mxu0
    %v149 = vxor.u32 %v147, 2147483648
    %v150 = vmul.f32 %v149, 1.442695
    %v151 = vpow.pop %v150
    %v152 = vadd.f32 %v151, 1.0
    %v153 = vrcp.pop %v152
    %v154 = vmul.f32 %v152, %v153
    %v155 = vsub.f32 1.0, %v154
    %v156 = vmul.f32 %v153, %v155
    %v157 = vadd.f32 %v153, %v156
    %vm158 = vweird.f32 %v152
    %vm159 = vweird.f32 %v153
    %vm160 = vmor %vm158, %vm159
    %v161 = vsel %vm160, %v153, %v157
    %v162 = vand.u32 2147483647, %v152
    %vm163 = vcmp.eq.f32.partialorder %v162, 8.507059e+37
    %v164 = vand.u32 %v152, 2147483648
    %v165 = vor.u32 1.1754944e-38, %v164
    %v166 = vsel %vm163, %v165, %v161
    %v167 = vmul.f32 1.0, %v166
    %v168 = vperm.slane %v82, 0
    %169 = vmatpush.msra.mxu0 %v79
    %170 = vmatpush.msra.mxu0 %v78
    %171 = vmatpush.msra.mxu0 %v77
    %172 = vmatpush.msra.mxu0 %v76
    %173 = vmatpush.msra.mxu0 %v75
    %174 = vmatpush.msra.mxu0 %v74
    %175 = vmatpush.msra.mxu0 %v73
    %176 = vmatpush.msra.mxu0 %v72
    %177 = vmatpush.msra.mxu0 %v71
    %178 = vmatpush.msra.mxu0 %v70
    %179 = vmatpush.msra.mxu0 %v69
    %180 = vmatpush.msra.mxu0 %v68
    %181 = vmatpush.msra.mxu0 %v67
    %182 = vmatpush.msra.mxu0 %v66
    %183 = vmatpush.msra.mxu0 %v65
    %184 = vmatpush.msra.mxu0 %v64
    %185 = vmatmul.f32.gmra.mxu0 %v167
    %v186 = vpop.f32.mrf.mxu0
    %v187 = vadd.f32 %v168, %v186
    %188 = vdwg.mxu0
    %v189 = vlaneseq
    %v190 = vshrl.u32 %v189, 7
    %v191 = vlaneseq
    %v192 = vand.u32 %v191, 127
    %v193 = vmul.u32 %v190, 2654435769
    %v194 = vmul.u32 %v192, 2246822507
    %v195 = vadd.s32 %v193, %v194
    %s196 = smul.u32 %s45, 3266489909
    %v197 = vstv %s196
    %v198 = vadd.s32 %v195, %v197
    %v199 = vadd.s32 %v198, 668265263
    %v200 = vshrl.u32 %v199, 16
    %v201 = vxor.u32 %v199, %v200
    %v202 = vmul.u32 %v201, 2146121005
    %v203 = vshrl.u32 %v202, 15
    %v204 = vxor.u32 %v202, %v203
    %v205 = vmul.u32 %v204, 2221713035
    %v206 = vshrl.u32 %v205, 16
    %v207 = vxor.u32 %v205, %v206
    %v208 = vshrl.u32 %v207, 8
    %v209 = vcvt.s32.f32 %v208
    %v210 = vadd.f32 %v209, 0.5
    %v211 = vmul.f32 %v210, 5.9604645e-08
    %v212 = vlog2.pop %v211
    %v213 = vmul.f32 %v212, 0.6931472
    %v214 = vsub.f32 0.0, %v213
    %v215 = vlog2.pop %v214
    %v216 = vmul.f32 %v215, 0.6931472
    %v217 = vsub.f32 0.0, %v216
    %vm218 = vcmp.lt.s32.totalorder %v192, 4
    %v219 = vadd.f32 %v187, %v217
    %v220 = vsel %vm218, %v219, -1e+30
    %221 = vmax.xlane.f32.xlu0 %v220
    %v222 = vpop.xlane.xlu0 %221
    %vm223 = vcmp.eq.f32.partialorder %v220, %v222
    %v224 = vcvt.s32.f32 %v192
    %v225 = vsel %vm223, %v224, 128.0
    %226 = vmin.xlane.f32.xlu0 %v225
    %v227 = vpop.xlane.xlu0 %226
    %vm228 = vcmp.eq.s32.totalorder %v192, 127
    %v229 = vsel %vm228, %v227, %v187
    %230 = vst [vmem:[%s3] sm:$0xff] %v229
    // Predicated region
    $region22: #{policy_forward.1} parent=1 // pred_check
      _
    $region23: #{policy_forward.1} parent=1 // pred_check_branch
      %232 = sbr.rel (0) target = $region25
    $region24: #{policy_forward.1} parent=1 // pred_region
      _
    $region25: #{policy_forward.1} parent=1 // pred_fallthru
      _
    // Predicated region
    $region26: #{policy_forward.1} parent=1 // pred_check
      _
    $region27: #{policy_forward.1} parent=1 // pred_check_branch
      %234 = sbr.rel (0) target = $region29
    $region28: #{policy_forward.1} parent=1 // pred_region
      _
    $region29: #{policy_forward.1} parent=1 // pred_fallthru
      _
    %235 = vsyncpa [#allocation4], 1
    %236 = vsyncpa [#allocation6], 1

</llo_original>
